<compile_context>
chip_gen: v7x
topology: tpu7x:2x2x1
jax: 0.10.0
libtpu: 0.0.40
codegen_flags: <defaults>
</compile_context>

<pallas_src>
import functools
from math import prod, gcd

import jax
import jax.numpy as jnp
import numpy as np
from jax.experimental import pallas as pl
from jax.experimental.pallas import tpu as pltpu


def _lcm(a, b):
    return a * b // gcd(a, b)


def _dendritic_kernel(act_ref, wblk_ref, tproj_ref, out_ref, *, row_chunk):
    # act_ref  : [TR, PC*BL]  activation rows (native dtype, natural layout)
    # wblk_ref : [PC*BL, PCp] block-diagonal propagation weights (native dtype)
    # tproj_ref: [TR, PCp]    precomputed + tiled time projection (f32)
    # out_ref  : [TR, PCp]
    w = wblk_ref[...]
    rows = act_ref.shape[0]
    # Chunk rows so the f32 dendrite temporary stays small (bounded vreg/VMEM
    # pressure); static slices on refs are zero-cost views.
    for r0 in range(0, rows, row_chunk):
        rc = min(row_chunk, rows - r0)
        dend = jnp.dot(act_ref[r0:r0 + rc, :], w,
                       preferred_element_type=jnp.float32)       # [rc, PCp] f32
        pre = dend + tproj_ref[r0:r0 + rc, :]
        out_ref[r0:r0 + rc, :] = jax.nn.softplus(pre).astype(out_ref.dtype)


def _pick_row_block(R, T, bytes_per_row, *, sublane, target_bytes):
    """Row-block size: multiple of lcm(T, sublane), <= target_bytes of
    activations, preferring an even number of grid steps (v7x megacore),
    then exact blocking, then the largest tile (cdiv grid, masked tail)."""
    base = _lcm(T, sublane)
    if base >= R:
        return R                                   # single full block
    cap = max(base, (target_bytes // max(bytes_per_row, 1)) // base * base)
    cap = min(cap, (R // base) * base)
    cands = list(range(base, cap + 1, base))
    exact_even = [c for c in cands if R % c == 0 and (R // c) % 2 == 0]
    exact = [c for c in cands if R % c == 0]
    if exact_even:
        return max(exact_even)
    if exact:
        return max(exact)
    return max(cands)                              # partial tail, writes masked


@functools.partial(jax.jit, static_argnames=("num_neurons", "branching_factors"))
def dendritic_forward(activations, t_emb, prop_w, time_w, time_b,
                      *, num_neurons, branching_factors):
    """activations: [..., T, N, B1, ..., BL]; t_emb: [T, D].
    Returns softplus preactivation of shape [..., T, N, B1, ..., B_{L-1}]."""
    N = num_neurons
    bf = tuple(branching_factors)
    L = len(bf)
    BL = bf[-1]
    P = N * prod(bf[:-1])                          # number of output paths

    T = activations.shape[-(L + 2)]
    lead = activations.shape[:-(L + 2)]
    B = int(prod(lead)) if lead else 1
    R = B * T                                      # flattened rows
    act_dtype = activations.dtype
    itemsize = jnp.dtype(act_dtype).itemsize

    # ---- output-path chunking (keeps the weight tile ~512 KiB for any P) ----
    if P % 128 == 0:
        PC, NP = 128, P // 128
    else:
        PC, NP = P, 1
    PCp = ((PC + 127) // 128) * 128                # lane-dense chunk width
    Pp_total = NP * PCp

    # ---- batch-invariant precompute (tiny next to activation traffic) -------
    # Per-chunk block-diagonal weights, in the ACTIVATION dtype (no in-kernel
    # full-slab upcast): w_blk[c, pc*BL+bl, q] = w[c*PC+pc, bl] * (pc == q)
    w_flat = prop_w.reshape(P, BL).astype(jnp.float32)
    w_chunk = w_flat.reshape(NP, PC, BL)
    eye = jnp.eye(PC, PCp, dtype=jnp.float32)
    w_blk = (w_chunk[:, :, :, None] * eye[None, :, None, :]) \
        .reshape(NP, PC * BL, PCp).astype(act_dtype)

    # Time projection hoisted out of the grid loop, kept f32 for the add.
    tproj = (t_emb.astype(jnp.float32) @ time_w.astype(jnp.float32).T
             + time_b.astype(jnp.float32))                        # [T, P]
    tproj = tproj.reshape(T, NP, PC)
    if PCp != PC:
        tproj = jnp.pad(tproj, ((0, 0), (0, 0), (0, PCp - PC)))
    tproj = tproj.reshape(T, Pp_total)

    # ---- free (contiguous) view of activations: NO HBM transpose ------------
    act_k = activations.reshape(R, P * BL)

    # ---- row blocking: no divisor-of-batch restriction ----------------------
    packing = max(1, 4 // itemsize)
    sublane = 8 * packing                          # layout-preserving row tile
    bytes_per_row = P * BL * itemsize
    TR = _pick_row_block(R, T, bytes_per_row, sublane=sublane,
                         target_bytes=4 << 20)     # ~4 MiB slab: safe on v5e/v6e/v7x
    NR = pl.cdiv(R, TR)

    # Resident time-projection tile: row r of any block corresponds to
    # t = r % T because every block start is a multiple of TR (a multiple of T).
    tproj_tiled = jnp.tile(tproj, (TR // T, 1))    # [TR, Pp_total] f32

    kernel = functools.partial(_dendritic_kernel, row_chunk=256)

    act_bytes = R * P * BL * itemsize
    out_bytes = R * Pp_total * itemsize
    aux_bytes = NP * PC * BL * PCp * itemsize + TR * Pp_total * 4
    cost = pl.CostEstimate(
        flops=int(2 * R * PC * BL * PCp * NP),
        transcendentals=int(R * Pp_total),
        bytes_accessed=int(act_bytes + out_bytes + aux_bytes))

    out = pl.pallas_call(
        kernel,
        out_shape=jax.ShapeDtypeStruct((R, Pp_total), act_dtype),
        grid_spec=pltpu.PrefetchScalarGridSpec(
            num_scalar_prefetch=0,
            grid=(NP, NR),                         # path chunks outer -> weight tile re-fetched NP times only
            in_specs=[
                pl.BlockSpec((TR, PC * BL), lambda c, i: (i, c)),
                pl.BlockSpec((None, PC * BL, PCp), lambda c, i: (c, 0, 0)),
                pl.BlockSpec((TR, PCp), lambda c, i: (0, c)),
            ],
            out_specs=pl.BlockSpec((TR, PCp), lambda c, i: (i, c)),
        ),
        compiler_params=pltpu.CompilerParams(
            dimension_semantics=("parallel", "parallel")),
        cost_estimate=cost,
    )(act_k, w_blk, tproj_tiled)

    if Pp_total != P:
        # TODO(synk): when P is not a multiple of 128, downstream consumers could
        # take the padded layout directly to avoid this extra HBM pass.
        out = out[:, :P]
    return out.reshape(*lead, T, N, *bf[:-1])


def reference_forward(activations, t_emb, prop_w, time_w, time_b,
                      num_neurons, branching_factors):
    """Pure-JAX reference mirroring the PyTorch module (one leading batch dim)."""
    N = num_neurons
    bf = tuple(branching_factors)
    T = t_emb.shape[0]
    dendrite = (prop_w[None, None] * activations).sum(-1)          # [B, T, N, ..., B_{L-1}]
    tproj = (t_emb @ time_w.T + time_b).reshape(T, N, *bf[:-1])    # [T, N, ..., B_{L-1}]
    return jax.nn.softplus(dendrite + tproj[None])


if __name__ == "__main__":
    # Module hyper-parameters (small, lane-friendly: N*B1 = 128)
    num_neurons = 16
    branching_factors = (8, 8)        # [B1, B2]
    time_dim = 32
    batch = 4
    T = 8

    N = num_neurons
    B1, B2 = branching_factors
    P = N * B1

    key = jax.random.PRNGKey(0)
    k_act, k_t, k_pw, k_tw, k_tb = jax.random.split(key, 5)

    # inputs
    activations = jax.random.normal(k_act, (batch, T, N, B1, B2), jnp.float32)
    t_emb = jax.random.normal(k_t, (T, time_dim), jnp.float32)

    # deterministic parameter init (shapes match the PyTorch module)
    # propagation_weights [N, B1, B2], xavier_normal-style std
    fan_in = B1 * B2
    fan_out = N * B2
    xav_std = (2.0 / (fan_in + fan_out)) ** 0.5
    prop_w = xav_std * jax.random.normal(k_pw, (N, B1, B2), jnp.float32)

    # Linear(time_dim -> N*B1): weight [P, D], bias [P]
    lin_bound = 1.0 / (time_dim ** 0.5)
    time_w = jax.random.uniform(k_tw, (P, time_dim), jnp.float32,
                                minval=-lin_bound, maxval=lin_bound)
    time_b = jax.random.uniform(k_tb, (P,), jnp.float32,
                                minval=-lin_bound, maxval=lin_bound)

    out = dendritic_forward(activations, t_emb, prop_w, time_w, time_b,
                            num_neurons=num_neurons,
                            branching_factors=branching_factors)
    out = jax.block_until_ready(out)

    ref = reference_forward(activations, t_emb, prop_w, time_w, time_b,
                            num_neurons, branching_factors)
    np.testing.assert_allclose(np.asarray(out), np.asarray(ref),
                               rtol=1e-5, atol=1e-5)

    print("KERNEL_OK")
</pallas_src>

<mosaic_0001>
module attributes {stable_mosaic.version = 11 : i64} {
  func.func @_dendritic_kernel(%arg0: i32, %arg1: i32, %arg2: memref<16x1024xf32, #tpu.memory_space<vmem>>, %arg3: memref<1x1024x128xf32, #tpu.memory_space<vmem>>, %arg4: memref<16x128xf32, #tpu.memory_space<vmem>>, %arg5: memref<16x128xf32, #tpu.memory_space<vmem>>) attributes {dimension_semantics = [#tpu.dimension_semantics<parallel>, #tpu.dimension_semantics<parallel>], iteration_bounds = array<i64: 1, 2>, scalar_prefetch = 0 : i64, scratch_operands = 0 : i64, tpu.core_type = #tpu.core_type<tc>, window_params = [{transform_indices = @transform_0, window_bounds = array<i64: 16, 1024>}, {transform_indices = @transform_1, window_bounds = array<i64: 1, 1024, 128>}, {transform_indices = @transform_2, window_bounds = array<i64: 16, 128>}, {transform_indices = @transform_3, window_bounds = array<i64: 16, 128>}]} {
    %c0 = arith.constant 0 : index
    %c0_0 = arith.constant 0 : index
    %c0_1 = arith.constant 0 : index
    %0 = vector.load %arg3[%c0, %c0_0, %c0_1] : memref<1x1024x128xf32, #tpu.memory_space<vmem>>, vector<1x1024x128xf32>
    %1 = vector.shape_cast %0 : vector<1x1024x128xf32> to vector<1024x128xf32>
    %c0_2 = arith.constant 0 : index
    %c0_3 = arith.constant 0 : index
    %2 = vector.load %arg2[%c0_2, %c0_3] : memref<16x1024xf32, #tpu.memory_space<vmem>>, vector<16x1024xf32>
    %cst = arith.constant dense<0.000000e+00> : vector<16x128xf32>
    %3 = tpu.matmul %2, %1, %cst {dimension_numbers = #tpu.dot_dimension_numbers<[1], [0], [0], [1], [0, 0, 1, 1], [], []>} : vector<16x1024xf32>, vector<1024x128xf32>, vector<16x128xf32> -> vector<16x128xf32>
    %c0_4 = arith.constant 0 : index
    %c0_5 = arith.constant 0 : index
    %4 = vector.load %arg4[%c0_4, %c0_5] : memref<16x128xf32, #tpu.memory_space<vmem>>, vector<16x128xf32>
    %5 = arith.addf %3, %4 : vector<16x128xf32>
    %cst_6 = arith.constant 0.000000e+00 : f32
    %6 = vector.broadcast %cst_6 : f32 to vector<16x128xf32>
    %7 = arith.maximumf %5, %6 : vector<16x128xf32>
    %8 = vector.broadcast %cst_6 : f32 to vector<16x128xf32>
    %9 = arith.subf %5, %8 : vector<16x128xf32>
    %10 = arith.cmpf one, %9, %9 : vector<16x128xf32>
    %11 = vector.broadcast %cst_6 : f32 to vector<16x128xf32>
    %12 = arith.addf %5, %11 : vector<16x128xf32>
    %13 = math.absf %9 : vector<16x128xf32>
    %cst_7 = arith.constant 0.000000e+00 : f32
    %14 = vector.broadcast %cst_7 : f32 to vector<16x128xf32>
    %15 = arith.subf %14, %13 : vector<16x128xf32>
    %16 = math.exp %15 : vector<16x128xf32>
    %17 = math.log1p %16 : vector<16x128xf32>
    %18 = arith.addf %7, %17 : vector<16x128xf32>
    %19 = arith.select %10, %12, %18 : vector<16x128xi1>, vector<16x128xf32>
    %c0_8 = arith.constant 0 : index
    %c0_9 = arith.constant 0 : index
    %20 = vector.load %arg5[%c0_8, %c0_9] : memref<16x128xf32, #tpu.memory_space<vmem>>, vector<16x128xf32>
    tpu.vector_store %arg5[%c0_8, %c0_9], %19 {strides = array<i32>} : memref<16x128xf32, #tpu.memory_space<vmem>>, vector<16x128xf32>,
    return
  }
  func.func @transform_0(%arg0: i32, %arg1: i32) -> (i32, i32) {
    %c0_i32 = arith.constant 0 : i32
    return %arg1, %arg0 : i32, i32
  }
  func.func @transform_1(%arg0: i32, %arg1: i32) -> (i32, i32, i32) {
    %c0_i32 = arith.constant 0 : i32
    %c0_i32_0 = arith.constant 0 : i32
    %c0_i32_1 = arith.constant 0 : i32
    return %arg0, %c0_i32, %c0_i32_0 : i32, i32, i32
  }
  func.func @transform_2(%arg0: i32, %arg1: i32) -> (i32, i32) {
    %c0_i32 = arith.constant 0 : i32
    %c0_i32_0 = arith.constant 0 : i32
    return %c0_i32, %arg0 : i32, i32
  }
  func.func @transform_3(%arg0: i32, %arg1: i32) -> (i32, i32) {
    %c0_i32 = arith.constant 0 : i32
    return %arg1, %arg0 : i32, i32
  }
}

</mosaic_0001>

<llo_original>
// kernel: dendritic_forward.1
$region0: #{dendritic_forward.1}
  #allocation0 [shape = 'u32[]', space=smem, size = 0x4, offset = 0x4, fixed_abs, tag = 'smem constant byte address 0x4 - core index']
  #allocation1 [shape = 'u32[144,128]{1,0:T(1,128)}', space=vmem, size = 0x12000, scoped, tag = 'internal scratch']
  %s0 = inlined_call_operand.vmem [shape: f32[32,1024], index: 0, kind: input, shape index: {}]
  %s1 = inlined_call_operand.vmem [shape: f32[1,1024,128], index: 1, kind: input, shape index: {}]
  %s2 = inlined_call_operand.vmem [shape: f32[16,128], index: 2, kind: input, shape index: {}]
  %s3 = inlined_call_operand.vmem [shape: f32[32,128], index: 3, kind: output, shape index: {}]
  %s4 = sld [smem:[#allocation0]]
  $region45: #{dendritic_forward.1} parent=0
    _
  %s6 = ssub.s32 1, %s4
  %s7 = scalar_select 0, %s6, %s4
  loop: start=0, step=1, limit=4
  $region2: #{dendritic_forward.1} parent=0 // loop_pre_header
    _
  $region3: #{dendritic_forward.1} parent=0 // loop_header
    %s9 = sphi 0, %s13
    %p10 = scmp.ge.s32.totalorder %s9, 4
    %s16 = sphi 0, %s28
    %s17 = sphi 0, %s24
    %s18 = sphi 0, %s16
    %s19 = sphi 0, %s17
    %s20 = sphi 0, %s18
    %s21 = sphi 0, %s19
    %s33 = sphi 0, %s35
    %s36 = sphi 0, %s33
    %s37 = sphi 0, %s36
    %s53 = sphi 0, %s37
    %s59 = sphi 0, %s61
    %s62 = sphi 0, %s59
    %s63 = sphi 0, %s62
    %s79 = sphi 0, %s63
    %s85 = sphi 0, %s87
    %s88 = sphi 0, %s85
    %s89 = sphi 0, %s88
    %s105 = sphi 0, %s89
    %s113 = sphi 0, %s115
    %s116 = sphi 0, %s113
    %s117 = sphi 0, %s116
    %s133 = sphi 0, %s117
  $region4: #{dendritic_forward.1} parent=0 // loop_header_branch
    %12 = sbr.rel (%p10) target = $region8
  $region5: #{dendritic_forward.1} parent=0 // loop_body
    %s14 = ssub.s32 %s9, 1
    %s15 = ssub.s32 %s9, 2
    %s22 = sadd.s32 1, %s17
    %p23 = scmp.ge.s32.totalorder %s22, 2
    %s24 = scalar_select %p23, 0, %s22
    %s25 = sadd.s32 1, %s16
    %s26 = scalar_select %p23, %s25, %s16
    %p27 = scmp.ge.s32.totalorder %s26, 1
    %s28 = scalar_select %p27, 0, %s26
    %s29 = ssub.s32 %s17, %s24
    %s30 = ssub.s32 %s16, %s28
    %s31 = sor.u32 %s29, %s30
    %p32 = scmp.eq.s32.totalorder %s31, 0
    %s34 = sadd.s32 %s33, 1
    %s35 = scalar_select %p32, %s33, %s34
    %p38 = pneg %p32
    %p39 = scmp.eq.s32.totalorder %s9, 1
    %p40 = por %p38, %p39
    %p41 = scmp.ne.s32.totalorder %s33, %s36
    %p42 = scmp.eq.s32.totalorder %s9, 0
    %p43 = por %p41, %p42
    %p44 = scmp.ne.s32.totalorder %s33, %s36
    %p45 = scmp.eq.s32.totalorder %s14, 1
    %p46 = por %p44, %p45
    %p47 = scmp.ne.s32.totalorder %s36, %s37
    %p48 = scmp.eq.s32.totalorder %s14, 0
    %p49 = por %p47, %p48
    %p50 = scmp.ne.s32.totalorder %s36, %s37
    %p51 = scmp.eq.s32.totalorder %s15, 1
    %p52 = por %p50, %p51
    %p54 = scmp.ne.s32.totalorder %s37, %s53
    %p55 = scmp.eq.s32.totalorder %s15, 0
    %p56 = por %p54, %p55
    %s57 = ssub.s32 %s16, %s28
    %p58 = scmp.eq.s32.totalorder %s57, 0
    %s60 = sadd.s32 %s59, 1
    %s61 = scalar_select %p58, %s59, %s60
    %p64 = pneg %p58
    %p65 = scmp.eq.s32.totalorder %s9, 1
    %p66 = por %p64, %p65
    %p67 = scmp.ne.s32.totalorder %s59, %s62
    %p68 = scmp.eq.s32.totalorder %s9, 0
    %p69 = por %p67, %p68
    %p70 = scmp.ne.s32.totalorder %s59, %s62
    %p71 = scmp.eq.s32.totalorder %s14, 1
    %p72 = por %p70, %p71
    %p73 = scmp.ne.s32.totalorder %s62, %s63
    %p74 = scmp.eq.s32.totalorder %s14, 0
    %p75 = por %p73, %p74
    %p76 = scmp.ne.s32.totalorder %s62, %s63
    %p77 = scmp.eq.s32.totalorder %s15, 1
    %p78 = por %p76, %p77
    %p80 = scmp.ne.s32.totalorder %s63, %s79
    %p81 = scmp.eq.s32.totalorder %s15, 0
    %p82 = por %p80, %p81
    %s83 = ssub.s32 %s16, %s28
    %p84 = scmp.eq.s32.totalorder %s83, 0
    %s86 = sadd.s32 %s85, 1
    %s87 = scalar_select %p84, %s85, %s86
    %p90 = pneg %p84
    %p91 = scmp.eq.s32.totalorder %s9, 1
    %p92 = por %p90, %p91
    %p93 = scmp.ne.s32.totalorder %s85, %s88
    %p94 = scmp.eq.s32.totalorder %s9, 0
    %p95 = por %p93, %p94
    %p96 = scmp.ne.s32.totalorder %s85, %s88
    %p97 = scmp.eq.s32.totalorder %s14, 1
    %p98 = por %p96, %p97
    %p99 = scmp.ne.s32.totalorder %s88, %s89
    %p100 = scmp.eq.s32.totalorder %s14, 0
    %p101 = por %p99, %p100
    %p102 = scmp.ne.s32.totalorder %s88, %s89
    %p103 = scmp.eq.s32.totalorder %s15, 1
    %p104 = por %p102, %p103
    %p106 = scmp.ne.s32.totalorder %s89, %s105
    %p107 = scmp.eq.s32.totalorder %s15, 0
    %p108 = por %p106, %p107
    %s109 = ssub.s32 %s17, %s24
    %s110 = ssub.s32 %s16, %s28
    %s111 = sor.u32 %s109, %s110
    %p112 = scmp.eq.s32.totalorder %s111, 0
    %s114 = sadd.s32 %s113, 1
    %s115 = scalar_select %p112, %s113, %s114
    %p118 = pneg %p112
    %p119 = scmp.eq.s32.totalorder %s9, 1
    %p120 = por %p118, %p119
    %p121 = scmp.ne.s32.totalorder %s113, %s116
    %p122 = scmp.eq.s32.totalorder %s9, 0
    %p123 = por %p121, %p122
    %p124 = scmp.ne.s32.totalorder %s113, %s116
    %p125 = scmp.eq.s32.totalorder %s14, 1
    %p126 = por %p124, %p125
    %p127 = scmp.ne.s32.totalorder %s116, %s117
    %p128 = scmp.eq.s32.totalorder %s14, 0
    %p129 = por %p127, %p128
    %p130 = scmp.ne.s32.totalorder %s116, %s117
    %p131 = scmp.eq.s32.totalorder %s15, 1
    %p132 = por %p130, %p131
    %p134 = scmp.ne.s32.totalorder %s117, %s133
    %p135 = scmp.eq.s32.totalorder %s15, 0
    %p136 = por %p134, %p135
    %p137 = scmp.le.s32.totalorder 1, %s9
    %p138 = scmp.lt.s32.totalorder %s9, 3
    %p139 = pnand %p137, %p138
    %p140 = pneg %p139
    // Predicated region
    $region9: #{dendritic_forward.1} parent=5 // pred_check
      _
    $region10: #{dendritic_forward.1} parent=5 // pred_check_branch
      %142 = sbr.rel (%p139) target = $region12
    $region11: #{dendritic_forward.1} parent=5 // pred_region
      %s143 = ssub.s32 %s9, 1
      // Predicated region
      $region13: #{dendritic_forward.1} parent=11 // pred_check
        %p144 = pneg %p75
      $region14: #{dendritic_forward.1} parent=11 // pred_check_branch
        %146 = sbr.rel (%p144) target = $region16
      $region15: #{dendritic_forward.1} parent=11 // pred_region
        %p147 = scmp.lt.s32.totalorder %s18, 0
        %s148 = scalar_select %p147, %s18, 0
        %s149 = smul.addr %s148, 128
        %s150 = smul.addr %s149, 8
        %s151 = scalar_lea.vmem %s1, %s150
      $region16: #{dendritic_forward.1} parent=11 // pred_fallthru
        _
      // Predicated region
      $region17: #{dendritic_forward.1} parent=11 // pred_check
        %p152 = pneg %p101
      $region18: #{dendritic_forward.1} parent=11 // pred_check_branch
        %154 = sbr.rel (%p152) target = $region20
      $region19: #{dendritic_forward.1} parent=11 // pred_region
        %p155 = scmp.lt.s32.totalorder %s18, 0
        %s156 = scalar_select %p155, %s18, 0
        %s157 = smul.addr %s156, 8
        %s158 = scalar_lea.vmem %s2, %s157
      $region20: #{dendritic_forward.1} parent=11 // pred_fallthru
        _
    $region12: #{dendritic_forward.1} parent=5 // pred_fallthru
      _
    %p159 = scmp.lt.s32.totalorder %s9, 2
    // Predicated region
    $region21: #{dendritic_forward.1} parent=5 // pred_check
      %p160 = pneg %p159
    $region22: #{dendritic_forward.1} parent=5 // pred_check_branch
      %162 = sbr.rel (%p160) target = $region24
    $region23: #{dendritic_forward.1} parent=5 // pred_region
      // Predicated region
      $region25: #{dendritic_forward.1} parent=23 // pred_check
        %p163 = pneg %p43
      $region26: #{dendritic_forward.1} parent=23 // pred_check_branch
        %165 = sbr.rel (%p163) target = $region28
      $region27: #{dendritic_forward.1} parent=23 // pred_region
        %s166 = smul.u32 2, %s17
        %s167 = smul.u32 8, %s16
        %p168 = scmp.lt.s32.totalorder %s166, 3
        %s169 = scalar_select %p168, %s166, 3
        %p170 = scmp.lt.s32.totalorder %s167, 7
        %s171 = scalar_select %p170, %s167, 7
        %s172 = smul.addr %s169, 8
        %s173 = sadd.s32 %s171, %s172
        %s174 = smul.addr %s173, 8
        %s175 = scalar_lea.vmem %s0, %s174
        %s176 = smul.u32 2, %s17
        %s177 = smul.u32 8, %s16
      $region28: #{dendritic_forward.1} parent=23 // pred_fallthru
        _
    $region24: #{dendritic_forward.1} parent=5 // pred_fallthru
      _
    %p178 = scmp.le.s32.totalorder 1, %s9
    %p179 = scmp.lt.s32.totalorder %s9, 3
    %p180 = pnand %p178, %p179
    %p181 = pneg %p180
    // Predicated region
    $region29: #{dendritic_forward.1} parent=5 // pred_check
      _
    $region30: #{dendritic_forward.1} parent=5 // pred_check_branch
      %183 = sbr.rel (%p180) target = $region32
    $region31: #{dendritic_forward.1} parent=5 // pred_region
      %s184 = ssub.s32 %s9, 1
      %s185 = smul.u32 2, %s19
      %s186 = smul.u32 8, %s18
      %p187 = scmp.lt.s32.totalorder %s185, 3
      %s188 = scalar_select %p187, %s185, 3
      %p189 = scmp.lt.s32.totalorder %s186, 7
      %s190 = scalar_select %p189, %s186, 7
      %s191 = smul.addr %s188, 8
      %s192 = sadd.s32 %s190, %s191
      %s193 = smul.addr %s192, 8
      %s194 = scalar_lea.vmem %s0, %s193
      %p195 = pneg %p49
      %p196 = pneg %p46
      %p197 = scmp.lt.s32.totalorder %s18, 0
      %s198 = scalar_select %p197, %s18, 0
      %s199 = smul.addr %s198, 128
      %s200 = smul.addr %s199, 8
      %s201 = scalar_lea.vmem %s1, %s200
      %p202 = pneg %p75
      %p203 = pneg %p72
      %p204 = scmp.lt.s32.totalorder %s18, 0
      %s205 = scalar_select %p204, %s18, 0
      %s206 = smul.addr %s205, 8
      %s207 = scalar_lea.vmem %s2, %s206
      %p208 = pneg %p101
      %p209 = pneg %p98
      %p210 = pneg %p129
      %p211 = pneg %p126
      %s212 = smul.u32 2, %s19
      %p213 = scmp.lt.s32.totalorder %s212, 3
      %s214 = scalar_select %p213, %s212, 3
      %p215 = scmp.lt.s32.totalorder %s18, 0
      %s216 = scalar_select %p215, %s18, 0
      %s217 = sadd.s32 %s216, %s214
      %s218 = smul.addr %s217, 8
      %s219 = scalar_lea.vmem %s3, %s218
      %s220 = smul.u32 2, %s19
      %s221 = smul.u32 8, %s18
      %p222 = scmp.lt.s32.totalorder %s220, 3
      %s223 = scalar_select %p222, %s220, 3
      %p224 = scmp.lt.s32.totalorder %s221, 7
      %s225 = scalar_select %p224, %s221, 7
      %s226 = smul.addr %s223, 8
      %s227 = sadd.s32 %s225, %s226
      %s228 = smul.addr %s227, 8
      %s229 = scalar_lea.vmem %s0, %s228
      %s230 = smul.u32 2, %s19
      %s231 = smul.u32 8, %s18
      %p232 = scmp.lt.s32.totalorder %s18, 0
      %s233 = scalar_select %p232, %s18, 0
      %s234 = smul.addr %s233, 128
      %s235 = smul.addr %s234, 8
      %s236 = scalar_lea.vmem %s1, %s235
      %p237 = scmp.lt.s32.totalorder %s18, 0
      %s238 = scalar_select %p237, %s18, 0
      %s239 = smul.addr %s238, 8
      %s240 = scalar_lea.vmem %s2, %s239
      %s241 = smul.u32 2, %s19
      %p242 = scmp.lt.s32.totalorder %s241, 3
      %s243 = scalar_select %p242, %s241, 3
      %p244 = scmp.lt.s32.totalorder %s18, 0
      %s245 = scalar_select %p244, %s18, 0
      %s246 = sadd.s32 %s245, %s243
      %s247 = smul.addr %s246, 8
      %s248 = scalar_lea.vmem %s3, %s247
      %s249 = smul.u32 2, %s19
      %v250 = vld [vmem:[%s236] sm:$0xff]
      %v251 = vld [vmem:[%s236 + $0x8] sm:$0xff]
      %v252 = vld [vmem:[%s236 + $0x10] sm:$0xff]
      %v253 = vld [vmem:[%s236 + $0x18] sm:$0xff]
      %v254 = vld [vmem:[%s236 + $0x20] sm:$0xff]
      %v255 = vld [vmem:[%s236 + $0x28] sm:$0xff]
      %v256 = vld [vmem:[%s236 + $0x30] sm:$0xff]
      %v257 = vld [vmem:[%s236 + $0x38] sm:$0xff]
      %v258 = vld [vmem:[%s236 + $0x40] sm:$0xff]
      %v259 = vld [vmem:[%s236 + $0x48] sm:$0xff]
      %v260 = vld [vmem:[%s236 + $0x50] sm:$0xff]
      %v261 = vld [vmem:[%s236 + $0x58] sm:$0xff]
      %v262 = vld [vmem:[%s236 + $0x60] sm:$0xff]
      %v263 = vld [vmem:[%s236 + $0x68] sm:$0xff]
      %v264 = vld [vmem:[%s236 + $0x70] sm:$0xff]
      %v265 = vld [vmem:[%s236 + $0x78] sm:$0xff]
      %v266 = vld [vmem:[%s236 + $0x80] sm:$0xff]
      %v267 = vld [vmem:[%s236 + $0x88] sm:$0xff]
      %v268 = vld [vmem:[%s236 + $0x90] sm:$0xff]
      %v269 = vld [vmem:[%s236 + $0x98] sm:$0xff]
      %v270 = vld [vmem:[%s236 + $0xa0] sm:$0xff]
      %v271 = vld [vmem:[%s236 + $0xa8] sm:$0xff]
      %v272 = vld [vmem:[%s236 + $0xb0] sm:$0xff]
      %v273 = vld [vmem:[%s236 + $0xb8] sm:$0xff]
      %v274 = vld [vmem:[%s236 + $0xc0] sm:$0xff]
      %v275 = vld [vmem:[%s236 + $0xc8] sm:$0xff]
      %v276 = vld [vmem:[%s236 + $0xd0] sm:$0xff]
      %v277 = vld [vmem:[%s236 + $0xd8] sm:$0xff]
      %v278 = vld [vmem:[%s236 + $0xe0] sm:$0xff]
      %v279 = vld [vmem:[%s236 + $0xe8] sm:$0xff]
      %v280 = vld [vmem:[%s236 + $0xf0] sm:$0xff]
      %v281 = vld [vmem:[%s236 + $0xf8] sm:$0xff]
      %v282 = vld [vmem:[%s236 + $0x100] sm:$0xff]
      %v283 = vld [vmem:[%s236 + $0x108] sm:$0xff]
      %v284 = vld [vmem:[%s236 + $0x110] sm:$0xff]
      %v285 = vld [vmem:[%s236 + $0x118] sm:$0xff]
      %v286 = vld [vmem:[%s236 + $0x120] sm:$0xff]
      %v287 = vld [vmem:[%s236 + $0x128] sm:$0xff]
      %v288 = vld [vmem:[%s236 + $0x130] sm:$0xff]
      %v289 = vld [vmem:[%s236 + $0x138] sm:$0xff]
      %v290 = vld [vmem:[%s236 + $0x140] sm:$0xff]
      %v291 = vld [vmem:[%s236 + $0x148] sm:$0xff]
      %v292 = vld [vmem:[%s236 + $0x150] sm:$0xff]
      %v293 = vld [vmem:[%s236 + $0x158] sm:$0xff]
      %v294 = vld [vmem:[%s236 + $0x160] sm:$0xff]
      %v295 = vld [vmem:[%s236 + $0x168] sm:$0xff]
      %v296 = vld [vmem:[%s236 + $0x170] sm:$0xff]
      %v297 = vld [vmem:[%s236 + $0x178] sm:$0xff]
      %v298 = vld [vmem:[%s236 + $0x180] sm:$0xff]
      %v299 = vld [vmem:[%s236 + $0x188] sm:$0xff]
      %v300 = vld [vmem:[%s236 + $0x190] sm:$0xff]
      %v301 = vld [vmem:[%s236 + $0x198] sm:$0xff]
      %v302 = vld [vmem:[%s236 + $0x1a0] sm:$0xff]
      %v303 = vld [vmem:[%s236 + $0x1a8] sm:$0xff]
      %v304 = vld [vmem:[%s236 + $0x1b0] sm:$0xff]
      %v305 = vld [vmem:[%s236 + $0x1b8] sm:$0xff]
      %v306 = vld [vmem:[%s236 + $0x1c0] sm:$0xff]
      %v307 = vld [vmem:[%s236 + $0x1c8] sm:$0xff]
      %v308 = vld [vmem:[%s236 + $0x1d0] sm:$0xff]
      %v309 = vld [vmem:[%s236 + $0x1d8] sm:$0xff]
      %v310 = vld [vmem:[%s236 + $0x1e0] sm:$0xff]
      %v311 = vld [vmem:[%s236 + $0x1e8] sm:$0xff]
      %v312 = vld [vmem:[%s236 + $0x1f0] sm:$0xff]
      %v313 = vld [vmem:[%s236 + $0x1f8] sm:$0xff]
      %v314 = vld [vmem:[%s236 + $0x200] sm:$0xff]
      %v315 = vld [vmem:[%s236 + $0x208] sm:$0xff]
      %v316 = vld [vmem:[%s236 + $0x210] sm:$0xff]
      %v317 = vld [vmem:[%s236 + $0x218] sm:$0xff]
      %v318 = vld [vmem:[%s236 + $0x220] sm:$0xff]
      %v319 = vld [vmem:[%s236 + $0x228] sm:$0xff]
      %v320 = vld [vmem:[%s236 + $0x230] sm:$0xff]
      %v321 = vld [vmem:[%s236 + $0x238] sm:$0xff]
      %v322 = vld [vmem:[%s236 + $0x240] sm:$0xff]
      %v323 = vld [vmem:[%s236 + $0x248] sm:$0xff]
      %v324 = vld [vmem:[%s236 + $0x250] sm:$0xff]
      %v325 = vld [vmem:[%s236 + $0x258] sm:$0xff]
      %v326 = vld [vmem:[%s236 + $0x260] sm:$0xff]
      %v327 = vld [vmem:[%s236 + $0x268] sm:$0xff]
      %v328 = vld [vmem:[%s236 + $0x270] sm:$0xff]
      %v329 = vld [vmem:[%s236 + $0x278] sm:$0xff]
      %v330 = vld [vmem:[%s236 + $0x280] sm:$0xff]
      %v331 = vld [vmem:[%s236 + $0x288] sm:$0xff]
      %v332 = vld [vmem:[%s236 + $0x290] sm:$0xff]
      %v333 = vld [vmem:[%s236 + $0x298] sm:$0xff]
      %v334 = vld [vmem:[%s236 + $0x2a0] sm:$0xff]
      %v335 = vld [vmem:[%s236 + $0x2a8] sm:$0xff]
      %v336 = vld [vmem:[%s236 + $0x2b0] sm:$0xff]
      %v337 = vld [vmem:[%s236 + $0x2b8] sm:$0xff]
      %v338 = vld [vmem:[%s236 + $0x2c0] sm:$0xff]
      %v339 = vld [vmem:[%s236 + $0x2c8] sm:$0xff]
      %v340 = vld [vmem:[%s236 + $0x2d0] sm:$0xff]
      %v341 = vld [vmem:[%s236 + $0x2d8] sm:$0xff]
      %v342 = vld [vmem:[%s236 + $0x2e0] sm:$0xff]
      %v343 = vld [vmem:[%s236 + $0x2e8] sm:$0xff]
      %v344 = vld [vmem:[%s236 + $0x2f0] sm:$0xff]
      %v345 = vld [vmem:[%s236 + $0x2f8] sm:$0xff]
      %v346 = vld [vmem:[%s236 + $0x300] sm:$0xff]
      %v347 = vld [vmem:[%s236 + $0x308] sm:$0xff]
      %v348 = vld [vmem:[%s236 + $0x310] sm:$0xff]
      %v349 = vld [vmem:[%s236 + $0x318] sm:$0xff]
      %v350 = vld [vmem:[%s236 + $0x320] sm:$0xff]
      %v351 = vld [vmem:[%s236 + $0x328] sm:$0xff]
      %v352 = vld [vmem:[%s236 + $0x330] sm:$0xff]
      %v353 = vld [vmem:[%s236 + $0x338] sm:$0xff]
      %v354 = vld [vmem:[%s236 + $0x340] sm:$0xff]
      %v355 = vld [vmem:[%s236 + $0x348] sm:$0xff]
      %v356 = vld [vmem:[%s236 + $0x350] sm:$0xff]
      %v357 = vld [vmem:[%s236 + $0x358] sm:$0xff]
      %v358 = vld [vmem:[%s236 + $0x360] sm:$0xff]
      %v359 = vld [vmem:[%s236 + $0x368] sm:$0xff]
      %v360 = vld [vmem:[%s236 + $0x370] sm:$0xff]
      %v361 = vld [vmem:[%s236 + $0x378] sm:$0xff]
      %v362 = vld [vmem:[%s236 + $0x380] sm:$0xff]
      %v363 = vld [vmem:[%s236 + $0x388] sm:$0xff]
      %v364 = vld [vmem:[%s236 + $0x390] sm:$0xff]
      %v365 = vld [vmem:[%s236 + $0x398] sm:$0xff]
      %v366 = vld [vmem:[%s236 + $0x3a0] sm:$0xff]
      %v367 = vld [vmem:[%s236 + $0x3a8] sm:$0xff]
      %v368 = vld [vmem:[%s236 + $0x3b0] sm:$0xff]
      %v369 = vld [vmem:[%s236 + $0x3b8] sm:$0xff]
      %v370 = vld [vmem:[%s236 + $0x3c0] sm:$0xff]
      %v371 = vld [vmem:[%s236 + $0x3c8] sm:$0xff]
      %v372 = vld [vmem:[%s236 + $0x3d0] sm:$0xff]
      %v373 = vld [vmem:[%s236 + $0x3d8] sm:$0xff]
      %v374 = vld [vmem:[%s236 + $0x3e0] sm:$0xff]
      %v375 = vld [vmem:[%s236 + $0x3e8] sm:$0xff]
      %v376 = vld [vmem:[%s236 + $0x3f0] sm:$0xff]
      %v377 = vld [vmem:[%s236 + $0x3f8] sm:$0xff]
      %v378 = vld [vmem:[%s229] sm:$0xff]
      %v379 = vld [vmem:[%s229 + $0x8] sm:$0xff]
      %v380 = vld [vmem:[%s229 + $0x10] sm:$0xff]
      %v381 = vld [vmem:[%s229 + $0x18] sm:$0xff]
      %v382 = vld [vmem:[%s229 + $0x20] sm:$0xff]
      %v383 = vld [vmem:[%s229 + $0x28] sm:$0xff]
      %v384 = vld [vmem:[%s229 + $0x30] sm:$0xff]
      %v385 = vld [vmem:[%s229 + $0x38] sm:$0xff]
      %v386 = vld [vmem:[%s229 + $0x40] sm:$0xff]
      %v387 = vld [vmem:[%s229 + $0x48] sm:$0xff]
      %v388 = vld [vmem:[%s229 + $0x50] sm:$0xff]
      %v389 = vld [vmem:[%s229 + $0x58] sm:$0xff]
      %v390 = vld [vmem:[%s229 + $0x60] sm:$0xff]
      %v391 = vld [vmem:[%s229 + $0x68] sm:$0xff]
      %v392 = vld [vmem:[%s229 + $0x70] sm:$0xff]
      %v393 = vld [vmem:[%s229 + $0x78] sm:$0xff]
      %v394 = vld [vmem:[%s240] sm:$0xff]
      %v395 = vld [vmem:[%s240 + $0x8] sm:$0xff]
      %396 = vmatprep.subr.mxu0 0.0
      %397 = vmatpush1.msra.mxu0 %v250
      %398 = vmatprep.subr.mxu0 0.0
      %399 = vmatpush1.msra.mxu0 %v251
      %400 = vmatprep.subr.mxu0 0.0
      %401 = vmatpush1.msra.mxu0 %v252
      %402 = vmatprep.subr.mxu0 0.0
      %403 = vmatpush1.msra.mxu0 %v253
      %404 = vmatprep.subr.mxu0 0.0
      %405 = vmatpush1.msra.mxu0 %v254
      %406 = vmatprep.subr.mxu0 0.0
      %407 = vmatpush1.msra.mxu0 %v255
      %408 = vmatprep.subr.mxu0 0.0
      %409 = vmatpush1.msra.mxu0 %v256
      %410 = vmatprep.subr.mxu0 0.0
      %411 = vmatpush1.msra.mxu0 %v257
      %412 = vmatprep.subr.mxu0 0.0
      %413 = vmatpush1.msra.mxu0 %v258
      %414 = vmatprep.subr.mxu0 0.0
      %415 = vmatpush1.msra.mxu0 %v259
      %416 = vmatprep.subr.mxu0 0.0
      %417 = vmatpush1.msra.mxu0 %v260
      %418 = vmatprep.subr.mxu0 0.0
      %419 = vmatpush1.msra.mxu0 %v261
      %420 = vmatprep.subr.mxu0 0.0
      %421 = vmatpush1.msra.mxu0 %v262
      %422 = vmatprep.subr.mxu0 0.0
      %423 = vmatpush1.msra.mxu0 %v263
      %424 = vmatprep.subr.mxu0 0.0
      %425 = vmatpush1.msra.mxu0 %v264
      %426 = vmatprep.subr.mxu0 0.0
      %427 = vmatpush1.msra.mxu0 %v265
      %428 = vmatprep.subr.mxu0 0.0
      %429 = vmatpush1.msra.mxu0 %v266
      %430 = vmatprep.subr.mxu0 0.0
      %431 = vmatpush1.msra.mxu0 %v267
      %432 = vmatprep.subr.mxu0 0.0
      %433 = vmatpush1.msra.mxu0 %v268
      %434 = vmatprep.subr.mxu0 0.0
      %435 = vmatpush1.msra.mxu0 %v269
      %436 = vmatprep.subr.mxu0 0.0
      %437 = vmatpush1.msra.mxu0 %v270
      %438 = vmatprep.subr.mxu0 0.0
      %439 = vmatpush1.msra.mxu0 %v271
      %440 = vmatprep.subr.mxu0 0.0
      %441 = vmatpush1.msra.mxu0 %v272
      %442 = vmatprep.subr.mxu0 0.0
      %443 = vmatpush1.msra.mxu0 %v273
      %444 = vmatprep.subr.mxu0 0.0
      %445 = vmatpush1.msra.mxu0 %v274
      %446 = vmatprep.subr.mxu0 0.0
      %447 = vmatpush1.msra.mxu0 %v275
      %448 = vmatprep.subr.mxu0 0.0
      %449 = vmatpush1.msra.mxu0 %v276
      %450 = vmatprep.subr.mxu0 0.0
      %451 = vmatpush1.msra.mxu0 %v277
      %452 = vmatprep.subr.mxu0 0.0
      %453 = vmatpush1.msra.mxu0 %v278
      %454 = vmatprep.subr.mxu0 0.0
      %455 = vmatpush1.msra.mxu0 %v279
      %456 = vmatprep.subr.mxu0 0.0
      %457 = vmatpush1.msra.mxu0 %v280
      %458 = vmatprep.subr.mxu0 0.0
      %459 = vmatpush1.msra.mxu0 %v281
      %460 = vmatprep.mubr.f32.mxu0 %v379
      %461 = vmatmul.mubr.f32.gmra.mrb[0].mxu0 %v378
      %v462 = vpop.f32.mrb[0].mxu0
      %v463 = vadd.f32 %v394, %v462
      %v464 = vpop.f32.mrb[0].mxu0
      %465 = vmatprep.mubr.f32.mxu0 %v387
      %466 = vmatmul.mubr.f32.gmra.mrb[0].mxu0 %v386
      %v467 = vpop.f32.mrb[0].mxu0
      %v468 = vadd.f32 %v395, %v467
      %v469 = vpop.f32.mrb[0].mxu0
      %470 = vdwg.mxu0
      %471 = vmatprep.subr.mxu0 0.0
      %472 = vmatpush1.msra.mxu0 %v282
      %473 = vmatprep.subr.mxu0 0.0
      %474 = vmatpush1.msra.mxu0 %v283
      %475 = vmatprep.subr.mxu0 0.0
      %476 = vmatpush1.msra.mxu0 %v284
      %477 = vmatprep.subr.mxu0 0.0
      %478 = vmatpush1.msra.mxu0 %v285
      %479 = vmatprep.subr.mxu0 0.0
      %480 = vmatpush1.msra.mxu0 %v286
      %481 = vmatprep.subr.mxu0 0.0
      %482 = vmatpush1.msra.mxu0 %v287
      %483 = vmatprep.subr.mxu0 0.0
      %484 = vmatpush1.msra.mxu0 %v288
      %485 = vmatprep.subr.mxu0 0.0
      %486 = vmatpush1.msra.mxu0 %v289
      %487 = vmatprep.subr.mxu0 0.0
      %488 = vmatpush1.msra.mxu0 %v290
      %489 = vmatprep.subr.mxu0 0.0
      %490 = vmatpush1.msra.mxu0 %v291
      %491 = vmatprep.subr.mxu0 0.0
      %492 = vmatpush1.msra.mxu0 %v292
      %493 = vmatprep.subr.mxu0 0.0
      %494 = vmatpush1.msra.mxu0 %v293
      %495 = vmatprep.subr.mxu0 0.0
      %496 = vmatpush1.msra.mxu0 %v294
      %497 = vmatprep.subr.mxu0 0.0
      %498 = vmatpush1.msra.mxu0 %v295
      %499 = vmatprep.subr.mxu0 0.0
      %500 = vmatpush1.msra.mxu0 %v296
      %501 = vmatprep.subr.mxu0 0.0
      %502 = vmatpush1.msra.mxu0 %v297
      %503 = vmatprep.subr.mxu0 0.0
      %504 = vmatpush1.msra.mxu0 %v298
      %505 = vmatprep.subr.mxu0 0.0
      %506 = vmatpush1.msra.mxu0 %v299
      %507 = vmatprep.subr.mxu0 0.0
      %508 = vmatpush1.msra.mxu0 %v300
      %509 = vmatprep.subr.mxu0 0.0
      %510 = vmatpush1.msra.mxu0 %v301
      %511 = vmatprep.subr.mxu0 0.0
      %512 = vmatpush1.msra.mxu0 %v302
      %513 = vmatprep.subr.mxu0 0.0
      %514 = vmatpush1.msra.mxu0 %v303
      %515 = vmatprep.subr.mxu0 0.0
      %516 = vmatpush1.msra.mxu0 %v304
      %517 = vmatprep.subr.mxu0 0.0
      %518 = vmatpush1.msra.mxu0 %v305
      %519 = vmatprep.subr.mxu0 0.0
      %520 = vmatpush1.msra.mxu0 %v306
      %521 = vmatprep.subr.mxu0 0.0
      %522 = vmatpush1.msra.mxu0 %v307
      %523 = vmatprep.subr.mxu0 0.0
      %524 = vmatpush1.msra.mxu0 %v308
      %525 = vmatprep.subr.mxu0 0.0
      %526 = vmatpush1.msra.mxu0 %v309
      %527 = vmatprep.subr.mxu0 0.0
      %528 = vmatpush1.msra.mxu0 %v310
      %529 = vmatprep.subr.mxu0 0.0
      %530 = vmatpush1.msra.mxu0 %v311
      %531 = vmatprep.subr.mxu0 0.0
      %532 = vmatpush1.msra.mxu0 %v312
      %533 = vmatprep.subr.mxu0 0.0
      %534 = vmatpush1.msra.mxu0 %v313
      %535 = vmatprep.mubr.f32.mxu0 %v381
      %536 = vmatmul.mubr.f32.gmra.mrb[0].mxu0 %v380
      %v537 = vpop.f32.mrb[0].mxu0
      %v538 = vadd.f32 %v463, %v537
      %v539 = vpop.f32.mrb[0].mxu0
      %540 = vmatprep.mubr.f32.mxu0 %v389
      %541 = vmatmul.mubr.f32.gmra.mrb[0].mxu0 %v388
      %v542 = vpop.f32.mrb[0].mxu0
      %v543 = vadd.f32 %v468, %v542
      %v544 = vpop.f32.mrb[0].mxu0
      %545 = vdwg.mxu0
      %546 = vmatprep.subr.mxu0 0.0
      %547 = vmatpush1.msra.mxu0 %v314
      %548 = vmatprep.subr.mxu0 0.0
      %549 = vmatpush1.msra.mxu0 %v315
      %550 = vmatprep.subr.mxu0 0.0
      %551 = vmatpush1.msra.mxu0 %v316
      %552 = vmatprep.subr.mxu0 0.0
      %553 = vmatpush1.msra.mxu0 %v317
      %554 = vmatprep.subr.mxu0 0.0
      %555 = vmatpush1.msra.mxu0 %v318
      %556 = vmatprep.subr.mxu0 0.0
      %557 = vmatpush1.msra.mxu0 %v319
      %558 = vmatprep.subr.mxu0 0.0
      %559 = vmatpush1.msra.mxu0 %v320
      %560 = vmatprep.subr.mxu0 0.0
      %561 = vmatpush1.msra.mxu0 %v321
      %562 = vmatprep.subr.mxu0 0.0
      %563 = vmatpush1.msra.mxu0 %v322
      %564 = vmatprep.subr.mxu0 0.0
      %565 = vmatpush1.msra.mxu0 %v323
      %566 = vmatprep.subr.mxu0 0.0
      %567 = vmatpush1.msra.mxu0 %v324
      %568 = vmatprep.subr.mxu0 0.0
      %569 = vmatpush1.msra.mxu0 %v325
      %570 = vmatprep.subr.mxu0 0.0
      %571 = vmatpush1.msra.mxu0 %v326
      %572 = vmatprep.subr.mxu0 0.0
      %573 = vmatpush1.msra.mxu0 %v327
      %574 = vmatprep.subr.mxu0 0.0
      %575 = vmatpush1.msra.mxu0 %v328
      %576 = vmatprep.subr.mxu0 0.0
      %577 = vmatpush1.msra.mxu0 %v329
      %578 = vmatprep.subr.mxu0 0.0
      %579 = vmatpush1.msra.mxu0 %v330
      %580 = vmatprep.subr.mxu0 0.0
      %581 = vmatpush1.msra.mxu0 %v331
      %582 = vmatprep.subr.mxu0 0.0
      %583 = vmatpush1.msra.mxu0 %v332
      %584 = vmatprep.subr.mxu0 0.0
      %585 = vmatpush1.msra.mxu0 %v333
      %586 = vmatprep.subr.mxu0 0.0
      %587 = vmatpush1.msra.mxu0 %v334
      %588 = vmatprep.subr.mxu0 0.0
      %589 = vmatpush1.msra.mxu0 %v335
      %590 = vmatprep.subr.mxu0 0.0
      %591 = vmatpush1.msra.mxu0 %v336
      %592 = vmatprep.subr.mxu0 0.0
      %593 = vmatpush1.msra.mxu0 %v337
      %594 = vmatprep.subr.mxu0 0.0
      %595 = vmatpush1.msra.mxu0 %v338
      %596 = vmatprep.subr.mxu0 0.0
      %597 = vmatpush1.msra.mxu0 %v339
      %598 = vmatprep.subr.mxu0 0.0
      %599 = vmatpush1.msra.mxu0 %v340
      %600 = vmatprep.subr.mxu0 0.0
      %601 = vmatpush1.msra.mxu0 %v341
      %602 = vmatprep.subr.mxu0 0.0
      %603 = vmatpush1.msra.mxu0 %v342
      %604 = vmatprep.subr.mxu0 0.0
      %605 = vmatpush1.msra.mxu0 %v343
      %606 = vmatprep.subr.mxu0 0.0
      %607 = vmatpush1.msra.mxu0 %v344
      %608 = vmatprep.subr.mxu0 0.0
      %609 = vmatpush1.msra.mxu0 %v345
      %610 = vmatprep.mubr.f32.mxu0 %v383
      %611 = vmatmul.mubr.f32.gmra.mrb[0].mxu0 %v382
      %v612 = vpop.f32.mrb[0].mxu0
      %v613 = vadd.f32 %v538, %v612
      %v614 = vpop.f32.mrb[0].mxu0
      %615 = vmatprep.mubr.f32.mxu0 %v391
      %616 = vmatmul.mubr.f32.gmra.mrb[0].mxu0 %v390
      %v617 = vpop.f32.mrb[0].mxu0
      %v618 = vadd.f32 %v543, %v617
      %v619 = vpop.f32.mrb[0].mxu0
      %620 = vdwg.mxu0
      %621 = vmatprep.subr.mxu0 0.0
      %622 = vmatpush1.msra.mxu0 %v346
      %623 = vmatprep.subr.mxu0 0.0
      %624 = vmatpush1.msra.mxu0 %v347
      %625 = vmatprep.subr.mxu0 0.0
      %626 = vmatpush1.msra.mxu0 %v348
      %627 = vmatprep.subr.mxu0 0.0
      %628 = vmatpush1.msra.mxu0 %v349
      %629 = vmatprep.subr.mxu0 0.0
      %630 = vmatpush1.msra.mxu0 %v350
      %631 = vmatprep.subr.mxu0 0.0
      %632 = vmatpush1.msra.mxu0 %v351
      %633 = vmatprep.subr.mxu0 0.0
      %634 = vmatpush1.msra.mxu0 %v352
      %635 = vmatprep.subr.mxu0 0.0
      %636 = vmatpush1.msra.mxu0 %v353
      %637 = vmatprep.subr.mxu0 0.0
      %638 = vmatpush1.msra.mxu0 %v354
      %639 = vmatprep.subr.mxu0 0.0
      %640 = vmatpush1.msra.mxu0 %v355
      %641 = vmatprep.subr.mxu0 0.0
      %642 = vmatpush1.msra.mxu0 %v356
      %643 = vmatprep.subr.mxu0 0.0
      %644 = vmatpush1.msra.mxu0 %v357
      %645 = vmatprep.subr.mxu0 0.0
      %646 = vmatpush1.msra.mxu0 %v358
      %647 = vmatprep.subr.mxu0 0.0
      %648 = vmatpush1.msra.mxu0 %v359
      %649 = vmatprep.subr.mxu0 0.0
      %650 = vmatpush1.msra.mxu0 %v360
      %651 = vmatprep.subr.mxu0 0.0
      %652 = vmatpush1.msra.mxu0 %v361
      %653 = vmatprep.subr.mxu0 0.0
      %654 = vmatpush1.msra.mxu0 %v362
      %655 = vmatprep.subr.mxu0 0.0
      %656 = vmatpush1.msra.mxu0 %v363
      %657 = vmatprep.subr.mxu0 0.0
      %658 = vmatpush1.msra.mxu0 %v364
      %659 = vmatprep.subr.mxu0 0.0
      %660 = vmatpush1.msra.mxu0 %v365
      %661 = vmatprep.subr.mxu0 0.0
      %662 = vmatpush1.msra.mxu0 %v366
      %663 = vmatprep.subr.mxu0 0.0
      %664 = vmatpush1.msra.mxu0 %v367
      %665 = vmatprep.subr.mxu0 0.0
      %666 = vmatpush1.msra.mxu0 %v368
      %667 = vmatprep.subr.mxu0 0.0
      %668 = vmatpush1.msra.mxu0 %v369
      %669 = vmatprep.subr.mxu0 0.0
      %670 = vmatpush1.msra.mxu0 %v370
      %671 = vmatprep.subr.mxu0 0.0
      %672 = vmatpush1.msra.mxu0 %v371
      %673 = vmatprep.subr.mxu0 0.0
      %674 = vmatpush1.msra.mxu0 %v372
      %675 = vmatprep.subr.mxu0 0.0
      %676 = vmatpush1.msra.mxu0 %v373
      %677 = vmatprep.subr.mxu0 0.0
      %678 = vmatpush1.msra.mxu0 %v374
      %679 = vmatprep.subr.mxu0 0.0
      %680 = vmatpush1.msra.mxu0 %v375
      %681 = vmatprep.subr.mxu0 0.0
      %682 = vmatpush1.msra.mxu0 %v376
      %683 = vmatprep.subr.mxu0 0.0
      %684 = vmatpush1.msra.mxu0 %v377
      %685 = vmatprep.mubr.f32.mxu0 %v385
      %686 = vmatmul.mubr.f32.gmra.mrb[0].mxu0 %v384
      %v687 = vpop.f32.mrb[0].mxu0
      %v688 = vadd.f32 %v613, %v687
      %v689 = vpop.f32.mrb[0].mxu0
      %690 = vmatprep.mubr.f32.mxu0 %v393
      %691 = vmatmul.mubr.f32.gmra.mrb[0].mxu0 %v392
      %v692 = vpop.f32.mrb[0].mxu0
      %v693 = vadd.f32 %v618, %v692
      %v694 = vpop.f32.mrb[0].mxu0
      %695 = vdwg.mxu0
      %v696 = vmax.f32 %v688, 0.0
      %v697 = vmax.f32 %v693, 0.0
      %vm698 = vcmp.ne.f32.partialorder %v688, %v688
      %vm699 = vcmp.ne.f32.partialorder %v693, %v693
      %v700 = vadd.f32 %v688, 0.0
      %v701 = vadd.f32 %v693, 0.0
      %v702 = vand.u32 2147483647, %v688
      %v703 = vand.u32 2147483647, %v693
      %v704 = vsub.f32 0.0, %v702
      %v705 = vsub.f32 0.0, %v703
      %v706 = vmul.f32 %v704, 1.442695
      %v707 = vpow.pop %v706
      %v708 = vmul.f32 %v705, 1.442695
      %v709 = vpow.pop %v708
      %v710 = vadd.f32 %v707, 1.0
      %v711 = vlog2.pop %v710
      %v712 = vmul.f32 %v711, 0.6931472
      %v713 = vmul.f32 -0.5, %v707
      %v714 = vadd.f32 %v713, 1.0
      %v715 = vmul.f32 %v714, %v707
      %v716 = vand.u32 2147483647, %v707
      %vm717 = vcmp.lt.f32.partialorder %v716, 0.0004427343
      %v718 = vsel %vm717, %v715, %v712
      %v719 = vadd.f32 %v709, 1.0
      %v720 = vlog2.pop %v719
      %v721 = vmul.f32 %v720, 0.6931472
      %v722 = vmul.f32 -0.5, %v709
      %v723 = vadd.f32 %v722, 1.0
      %v724 = vmul.f32 %v723, %v709
      %v725 = vand.u32 2147483647, %v709
      %vm726 = vcmp.lt.f32.partialorder %v725, 0.0004427343
      %v727 = vsel %vm726, %v724, %v721
      %v728 = vadd.f32 %v696, %v718
      %v729 = vadd.f32 %v697, %v727
      %v730 = vsel %vm698, %v700, %v728
      %v731 = vsel %vm699, %v701, %v729
      %732 = vst [vmem:[%s248] sm:$0xff] %v730
      %733 = vst [vmem:[%s248 + $0x8] sm:$0xff] %v731
      %s734 = smul.u32 2, %s19
      %p735 = scmp.lt.s32.totalorder %s734, 3
      %s736 = scalar_select %p735, %s734, 3
      %p737 = scmp.lt.s32.totalorder %s18, 0
      %s738 = scalar_select %p737, %s18, 0
      %s739 = sadd.s32 %s738, %s736
      %s740 = smul.addr %s739, 8
      %s741 = scalar_lea.vmem %s3, %s740
      // Predicated region
      $region33: #{dendritic_forward.1} parent=31 // pred_check
        %p742 = pneg %p126
      $region34: #{dendritic_forward.1} parent=31 // pred_check_branch
        %744 = sbr.rel (%p742) target = $region36
      $region35: #{dendritic_forward.1} parent=31 // pred_region
        %s745 = smul.u32 2, %s19
      $region36: #{dendritic_forward.1} parent=31 // pred_fallthru
        _
    $region32: #{dendritic_forward.1} parent=5 // pred_fallthru
      _
    %p746 = scmp.le.s32.totalorder 2, %s9
    // Predicated region
    $region37: #{dendritic_forward.1} parent=5 // pred_check
      %p747 = pneg %p746
    $region38: #{dendritic_forward.1} parent=5 // pred_check_branch
      %749 = sbr.rel (%p747) target = $region40
    $region39: #{dendritic_forward.1} parent=5 // pred_region
      %s750 = ssub.s32 %s9, 2
      // Predicated region
      $region41: #{dendritic_forward.1} parent=39 // pred_check
        %p751 = pneg %p132
      $region42: #{dendritic_forward.1} parent=39 // pred_check_branch
        %753 = sbr.rel (%p751) target = $region44
      $region43: #{dendritic_forward.1} parent=39 // pred_region
        %s754 = smul.u32 2, %s21
        %p755 = scmp.lt.s32.totalorder %s754, 3
        %s756 = scalar_select %p755, %s754, 3
        %p757 = scmp.lt.s32.totalorder %s20, 0
        %s758 = scalar_select %p757, %s20, 0
        %s759 = sadd.s32 %s758, %s756
        %s760 = smul.addr %s759, 8
        %s761 = scalar_lea.vmem %s3, %s760
      $region44: #{dendritic_forward.1} parent=39 // pred_fallthru
        _
    $region40: #{dendritic_forward.1} parent=5 // pred_fallthru
      _
  $region6: #{dendritic_forward.1} parent=0 // loop_footer
    %s13 = sadd.s32 1, %s9
  $region7: #{dendritic_forward.1} parent=0 // loop_footer_branch
    %8 = sbr.rel target = $region3
  $region8: #{dendritic_forward.1} parent=0 // loop_exit
    _

</llo_original>
